<compile_context>
chip_gen: v7x
topology: tpu7x:2x2x1
jax: 0.10.0
libtpu: 0.0.40
codegen_flags: <defaults>
</compile_context>

<pallas_src>
import jax
import jax.numpy as jnp
from jax.experimental import pallas as pl
from jax.experimental.pallas import tpu as pltpu

LANE = 128
BF16_SUBLANE = 16  # bf16 vreg packs (16, 128); keep batch tiles multiples of 16


def _round_up(x, m):
    return ((x + m - 1) // m) * m


def dynamics_kernel(y_ref, w_in_ref, b_in_ref, w_h_ref, b_h_ref,
                    w_out_ref, b_out_ref, out_ref):
    # y_ref:    (TB, D_pad)        bf16  (cat([s, a]) zero-padded)
    # w_in_ref: (D_pad, D_pad)     bf16   b_in_ref: (1, D_pad)   f32
    # w_h_ref:  (L, D_pad, D_pad)  bf16   b_h_ref:  (L, 1, D_pad) f32
    # w_out_ref:(D_pad, OUT_pad)   bf16  (fused [output_layer1 | output_layer2])
    # b_out_ref:(1, OUT_pad)       f32
    # out_ref:  (TB, OUT_pad)      bf16
    x = jnp.dot(y_ref[...], w_in_ref[...],
                preferred_element_type=jnp.float32) + b_in_ref[...]
    x = jnp.maximum(x, 0.0)
    for l in range(w_h_ref.shape[0]):        # static unroll over hidden layers
        x = jnp.dot(x.astype(w_h_ref.dtype), w_h_ref[l],
                    preferred_element_type=jnp.float32) + b_h_ref[l]
        x = jnp.maximum(x, 0.0)
    out = jnp.dot(x.astype(w_out_ref.dtype), w_out_ref[...],
                  preferred_element_type=jnp.float32) + b_out_ref[...]
    out_ref[...] = out.astype(out_ref.dtype)


def _pick_tile(B, tb_max):
    """Batch tile: multiple of 16, <= tb_max, and split into >=2 grid steps
    when possible so the 'parallel' axis shards across v7x's 2 TensorCores."""
    TB = min(tb_max, _round_up(B, BF16_SUBLANE))
    B_pad = _round_up(B, TB)
    if B_pad // TB < 2 and TB > BF16_SUBLANE:
        TB = _round_up(TB // 2, BF16_SUBLANE)
        B_pad = _round_up(B, TB)
    return TB, B_pad


def dynamics_forward(s, a, packed, *, tb_max=1024):
    """s: (B, state_dim), a: (B, action_dim).  Returns (r_k, s_k) like torch."""
    state_dim = packed["state_dim"]
    D = packed["D"]
    D_pad = packed["D_pad"]
    OUT_pad = packed["OUT_pad"]
    L = packed["layer_count"]

    B = s.shape[0]
    TB, B_pad = _pick_tile(B, tb_max)

    # Glue: single concat folds the feature zero-padding in, then cast + row
    # pad (fusable into one pass; weights were packed once, no per-call work).
    feat_pad = jnp.zeros((B, D_pad - D), jnp.float32)
    y = jnp.concatenate(
        [s.astype(jnp.float32), a.astype(jnp.float32), feat_pad], axis=-1)
    y = y.astype(jnp.bfloat16)
    y_p = jnp.pad(y, ((0, B_pad - B), (0, 0)))

    resident2 = lambda i: (0, 0)
    resident3 = lambda i: (0, 0, 0)

    out = pl.pallas_call(
        dynamics_kernel,
        out_shape=jax.ShapeDtypeStruct((B_pad, OUT_pad), jnp.bfloat16),
        grid=(B_pad // TB,),
        in_specs=[
            pl.BlockSpec((TB, D_pad), lambda i: (i, 0)),      # activations: tiled/pipelined
            pl.BlockSpec((D_pad, D_pad), resident2),          # weights: VMEM-resident
            pl.BlockSpec((1, D_pad), resident2),
            pl.BlockSpec((L, D_pad, D_pad), resident3),
            pl.BlockSpec((L, 1, D_pad), resident3),
            pl.BlockSpec((D_pad, OUT_pad), resident2),
            pl.BlockSpec((1, OUT_pad), resident2),
        ],
        out_specs=pl.BlockSpec((TB, OUT_pad), lambda i: (i, 0)),
        compiler_params=pltpu.CompilerParams(
            dimension_semantics=("parallel",)),
    )(y_p, packed["w_in"], packed["b_in"], packed["w_h"], packed["b_h"],
      packed["w_out"], packed["b_out"])

    s_k = out[:B, :state_dim].astype(jnp.float32)
    r_k = out[:B, state_dim:state_dim + 1].astype(jnp.float32)
    return r_k, s_k


def init_params(key, state_dim, action_dim, layer_count=4):
    """Torch-layout params: nn.Linear weight is (out_features, in_features)."""
    D = state_dim + action_dim
    keys = jax.random.split(key, 6 + 2 * layer_count)
    scale = 0.1
    return {
        "w_in": jax.random.normal(keys[0], (D, D), jnp.float32) * scale,
        "b_in": jax.random.normal(keys[1], (D,), jnp.float32) * scale,
        "hidden": [
            (jax.random.normal(keys[2 + 2 * i], (D, D), jnp.float32) * scale,
             jax.random.normal(keys[3 + 2 * i], (D,), jnp.float32) * scale)
            for i in range(layer_count)
        ],
        "w_out1": jax.random.normal(keys[2 + 2 * layer_count], (state_dim, D),
                                    jnp.float32) * scale,
        "b_out1": jax.random.normal(keys[3 + 2 * layer_count], (state_dim,),
                                    jnp.float32) * scale,
        "w_out2": jax.random.normal(keys[4 + 2 * layer_count], (1, D),
                                    jnp.float32) * scale,
        "b_out2": jax.random.normal(keys[5 + 2 * layer_count], (1,),
                                    jnp.float32) * scale,
    }


def pack_params(raw, state_dim, action_dim):
    """One-time packing: transpose to (in, out), zero-pad to lane width (128),
    cast weights to bf16, fuse the two output heads.  Done once so the per-call
    wrapper does no weight transposes/reshapes.  Requires layer_count >= 1."""
    D = state_dim + action_dim
    D_pad = _round_up(D, LANE)
    OUT_pad = _round_up(state_dim + 1, LANE)

    def pad_w(w_t, rows, cols):           # w_t: (in, out) f32
        buf = jnp.zeros((rows, cols), jnp.float32)
        buf = buf.at[:w_t.shape[0], :w_t.shape[1]].set(w_t)
        return buf.astype(jnp.bfloat16)

    def pad_b(b, cols):
        buf = jnp.zeros((1, cols), jnp.float32)
        return buf.at[0, :b.shape[0]].set(b)

    w_h = jnp.stack([pad_w(w.T, D_pad, D_pad) for w, _ in raw["hidden"]])
    b_h = jnp.stack([pad_b(b, D_pad) for _, b in raw["hidden"]])
    # Fused output head: cols [0:state_dim] -> s_k, col [state_dim] -> r_k.
    w_out_cat = jnp.concatenate([raw["w_out1"].T, raw["w_out2"].T], axis=1)
    b_out_cat = jnp.concatenate([raw["b_out1"], raw["b_out2"]], axis=0)
    return {
        "w_in": pad_w(raw["w_in"].T, D_pad, D_pad),
        "b_in": pad_b(raw["b_in"], D_pad),
        "w_h": w_h,
        "b_h": b_h,
        "w_out": pad_w(w_out_cat, D_pad, OUT_pad),
        "b_out": pad_b(b_out_cat, OUT_pad),
        "state_dim": state_dim,
        "D": D,
        "D_pad": D_pad,
        "OUT_pad": OUT_pad,
        "layer_count": len(raw["hidden"]),
    }


def reference_forward(s, a, raw):
    """Pure-JAX f32 reference reproducing the torch forward exactly."""
    y = jnp.concatenate([s.astype(jnp.float32), a.astype(jnp.float32)], axis=-1)
    y = jnp.maximum(y @ raw["w_in"].T + raw["b_in"], 0.0)
    for w, b in raw["hidden"]:
        y = jnp.maximum(y @ w.T + b, 0.0)
    s_k = y @ raw["w_out1"].T + raw["b_out1"]
    r_k = y @ raw["w_out2"].T + raw["b_out2"]
    return r_k, s_k


if __name__ == "__main__":
    state_dim, action_dim, layer_count = 32, 8, 4

    key = jax.random.PRNGKey(0)
    k_s, k_a, k_p = jax.random.split(key, 3)
    raw = init_params(k_p, state_dim, action_dim, layer_count)
    packed = pack_params(raw, state_dim, action_dim)

    # Check both the tiny-batch (1 grid step) and the multi-tile (>=2 steps,
    # v7x dual-TC) paths.  bf16 matmul inputs + bf16 output -> loose tolerance.
    for B in (2, 40):
        kb = jax.random.fold_in(key, B)
        s = jax.random.normal(jax.random.fold_in(kb, 0), (B, state_dim),
                              jnp.float32)
        a = jax.random.normal(jax.random.fold_in(kb, 1), (B, action_dim),
                              jnp.float32)

        r_k, s_k = dynamics_forward(s, a, packed)
        r_k, s_k = jax.block_until_ready((r_k, s_k))

        r_ref, s_ref = reference_forward(s, a, raw)
        assert r_k.shape == (B, 1) and s_k.shape == (B, state_dim)
        assert jnp.allclose(s_k, s_ref, atol=2e-2, rtol=2e-2), \
            float(jnp.max(jnp.abs(s_k - s_ref)))
        assert jnp.allclose(r_k, r_ref, atol=2e-2, rtol=2e-2), \
            float(jnp.max(jnp.abs(r_k - r_ref)))

    print("KERNEL_OK")
</pallas_src>

<mosaic_0001>
module attributes {stable_mosaic.version = 11 : i64} {
  func.func @dynamics_kernel(%arg0: i32, %arg1: memref<16x128xbf16, #tpu.memory_space<vmem>>, %arg2: memref<128x128xbf16, #tpu.memory_space<vmem>>, %arg3: memref<1x128xf32, #tpu.memory_space<vmem>>, %arg4: memref<4x128x128xbf16, #tpu.memory_space<vmem>>, %arg5: memref<4x1x128xf32, #tpu.memory_space<vmem>>, %arg6: memref<128x128xbf16, #tpu.memory_space<vmem>>, %arg7: memref<1x128xf32, #tpu.memory_space<vmem>>, %arg8: memref<16x128xbf16, #tpu.memory_space<vmem>>) attributes {dimension_semantics = [#tpu.dimension_semantics<parallel>], iteration_bounds = array<i64: 1>, scalar_prefetch = 0 : i64, scratch_operands = 0 : i64, tpu.core_type = #tpu.core_type<tc>, window_params = [{transform_indices = @transform_0, window_bounds = array<i64: 16, 128>}, {pipeline_mode = #tpu.pipeline_mode<synchronous>, transform_indices = @transform_1, window_bounds = array<i64: 128, 128>}, {pipeline_mode = #tpu.pipeline_mode<synchronous>, transform_indices = @transform_2, window_bounds = array<i64: 1, 128>}, {pipeline_mode = #tpu.pipeline_mode<synchronous>, transform_indices = @transform_3, window_bounds = array<i64: 4, 128, 128>}, {pipeline_mode = #tpu.pipeline_mode<synchronous>, transform_indices = @transform_4, window_bounds = array<i64: 4, 1, 128>}, {pipeline_mode = #tpu.pipeline_mode<synchronous>, transform_indices = @transform_5, window_bounds = array<i64: 128, 128>}, {pipeline_mode = #tpu.pipeline_mode<synchronous>, transform_indices = @transform_6, window_bounds = array<i64: 1, 128>}, {transform_indices = @transform_7, window_bounds = array<i64: 16, 128>}]} {
    %c0 = arith.constant 0 : index
    %c0_0 = arith.constant 0 : index
    %0 = vector.load %arg1[%c0, %c0_0] : memref<16x128xbf16, #tpu.memory_space<vmem>>, vector<16x128xbf16>
    %c0_1 = arith.constant 0 : index
    %c0_2 = arith.constant 0 : index
    %1 = vector.load %arg2[%c0_1, %c0_2] : memref<128x128xbf16, #tpu.memory_space<vmem>>, vector<128x128xbf16>
    %cst = arith.constant dense<0.000000e+00> : vector<16x128xf32>
    %2 = tpu.matmul %0, %1, %cst {dimension_numbers = #tpu.dot_dimension_numbers<[1], [0], [0], [1], [0, 0, 1, 1], [], []>} : vector<16x128xbf16>, vector<128x128xbf16>, vector<16x128xf32> -> vector<16x128xf32>
    %c0_3 = arith.constant 0 : index
    %c0_4 = arith.constant 0 : index
    %3 = vector.load %arg3[%c0_3, %c0_4] : memref<1x128xf32, #tpu.memory_space<vmem>>, vector<1x128xf32>
    %4 = vector.broadcast %3 : vector<1x128xf32> to vector<16x128xf32>
    %5 = arith.addf %2, %4 : vector<16x128xf32>
    %cst_5 = arith.constant 0.000000e+00 : f32
    %6 = vector.broadcast %cst_5 : f32 to vector<16x128xf32>
    %7 = arith.maximumf %5, %6 : vector<16x128xf32>
    %8 = arith.truncf %7 : vector<16x128xf32> to vector<16x128xbf16>
    %c0_6 = arith.constant 0 : index
    %c0_7 = arith.constant 0 : index
    %c0_8 = arith.constant 0 : index
    %9 = vector.load %arg4[%c0_6, %c0_7, %c0_8] : memref<4x128x128xbf16, #tpu.memory_space<vmem>>, vector<1x128x128xbf16>
    %10 = vector.shape_cast %9 : vector<1x128x128xbf16> to vector<128x128xbf16>
    %cst_9 = arith.constant dense<0.000000e+00> : vector<16x128xf32>
    %11 = tpu.matmul %8, %10, %cst_9 {dimension_numbers = #tpu.dot_dimension_numbers<[1], [0], [0], [1], [0, 0, 1, 1], [], []>} : vector<16x128xbf16>, vector<128x128xbf16>, vector<16x128xf32> -> vector<16x128xf32>
    %c0_10 = arith.constant 0 : index
    %c0_11 = arith.constant 0 : index
    %c0_12 = arith.constant 0 : index
    %12 = vector.load %arg5[%c0_10, %c0_11, %c0_12] : memref<4x1x128xf32, #tpu.memory_space<vmem>>, vector<1x1x128xf32>
    %13 = vector.shape_cast %12 : vector<1x1x128xf32> to vector<1x128xf32>
    %14 = vector.broadcast %13 : vector<1x128xf32> to vector<16x128xf32>
    %15 = arith.addf %11, %14 : vector<16x128xf32>
    %cst_13 = arith.constant 0.000000e+00 : f32
    %16 = vector.broadcast %cst_13 : f32 to vector<16x128xf32>
    %17 = arith.maximumf %15, %16 : vector<16x128xf32>
    %18 = arith.truncf %17 : vector<16x128xf32> to vector<16x128xbf16>
    %c1 = arith.constant 1 : index
    %c0_14 = arith.constant 0 : index
    %c0_15 = arith.constant 0 : index
    %19 = vector.load %arg4[%c1, %c0_14, %c0_15] : memref<4x128x128xbf16, #tpu.memory_space<vmem>>, vector<1x128x128xbf16>
    %20 = vector.shape_cast %19 : vector<1x128x128xbf16> to vector<128x128xbf16>
    %cst_16 = arith.constant dense<0.000000e+00> : vector<16x128xf32>
    %21 = tpu.matmul %18, %20, %cst_16 {dimension_numbers = #tpu.dot_dimension_numbers<[1], [0], [0], [1], [0, 0, 1, 1], [], []>} : vector<16x128xbf16>, vector<128x128xbf16>, vector<16x128xf32> -> vector<16x128xf32>
    %c1_17 = arith.constant 1 : index
    %c0_18 = arith.constant 0 : index
    %c0_19 = arith.constant 0 : index
    %22 = vector.load %arg5[%c1_17, %c0_18, %c0_19] : memref<4x1x128xf32, #tpu.memory_space<vmem>>, vector<1x1x128xf32>
    %23 = vector.shape_cast %22 : vector<1x1x128xf32> to vector<1x128xf32>
    %24 = vector.broadcast %23 : vector<1x128xf32> to vector<16x128xf32>
    %25 = arith.addf %21, %24 : vector<16x128xf32>
    %cst_20 = arith.constant 0.000000e+00 : f32
    %26 = vector.broadcast %cst_20 : f32 to vector<16x128xf32>
    %27 = arith.maximumf %25, %26 : vector<16x128xf32>
    %28 = arith.truncf %27 : vector<16x128xf32> to vector<16x128xbf16>
    %c2 = arith.constant 2 : index
    %c0_21 = arith.constant 0 : index
    %c0_22 = arith.constant 0 : index
    %29 = vector.load %arg4[%c2, %c0_21, %c0_22] : memref<4x128x128xbf16, #tpu.memory_space<vmem>>, vector<1x128x128xbf16>
    %30 = vector.shape_cast %29 : vector<1x128x128xbf16> to vector<128x128xbf16>
    %cst_23 = arith.constant dense<0.000000e+00> : vector<16x128xf32>
    %31 = tpu.matmul %28, %30, %cst_23 {dimension_numbers = #tpu.dot_dimension_numbers<[1], [0], [0], [1], [0, 0, 1, 1], [], []>} : vector<16x128xbf16>, vector<128x128xbf16>, vector<16x128xf32> -> vector<16x128xf32>
    %c2_24 = arith.constant 2 : index
    %c0_25 = arith.constant 0 : index
    %c0_26 = arith.constant 0 : index
    %32 = vector.load %arg5[%c2_24, %c0_25, %c0_26] : memref<4x1x128xf32, #tpu.memory_space<vmem>>, vector<1x1x128xf32>
    %33 = vector.shape_cast %32 : vector<1x1x128xf32> to vector<1x128xf32>
    %34 = vector.broadcast %33 : vector<1x128xf32> to vector<16x128xf32>
    %35 = arith.addf %31, %34 : vector<16x128xf32>
    %cst_27 = arith.constant 0.000000e+00 : f32
    %36 = vector.broadcast %cst_27 : f32 to vector<16x128xf32>
    %37 = arith.maximumf %35, %36 : vector<16x128xf32>
    %38 = arith.truncf %37 : vector<16x128xf32> to vector<16x128xbf16>
    %c3 = arith.constant 3 : index
    %c0_28 = arith.constant 0 : index
    %c0_29 = arith.constant 0 : index
    %39 = vector.load %arg4[%c3, %c0_28, %c0_29] : memref<4x128x128xbf16, #tpu.memory_space<vmem>>, vector<1x128x128xbf16>
    %40 = vector.shape_cast %39 : vector<1x128x128xbf16> to vector<128x128xbf16>
    %cst_30 = arith.constant dense<0.000000e+00> : vector<16x128xf32>
    %41 = tpu.matmul %38, %40, %cst_30 {dimension_numbers = #tpu.dot_dimension_numbers<[1], [0], [0], [1], [0, 0, 1, 1], [], []>} : vector<16x128xbf16>, vector<128x128xbf16>, vector<16x128xf32> -> vector<16x128xf32>
    %c3_31 = arith.constant 3 : index
    %c0_32 = arith.constant 0 : index
    %c0_33 = arith.constant 0 : index
    %42 = vector.load %arg5[%c3_31, %c0_32, %c0_33] : memref<4x1x128xf32, #tpu.memory_space<vmem>>, vector<1x1x128xf32>
    %43 = vector.shape_cast %42 : vector<1x1x128xf32> to vector<1x128xf32>
    %44 = vector.broadcast %43 : vector<1x128xf32> to vector<16x128xf32>
    %45 = arith.addf %41, %44 : vector<16x128xf32>
    %cst_34 = arith.constant 0.000000e+00 : f32
    %46 = vector.broadcast %cst_34 : f32 to vector<16x128xf32>
    %47 = arith.maximumf %45, %46 : vector<16x128xf32>
    %48 = arith.truncf %47 : vector<16x128xf32> to vector<16x128xbf16>
    %c0_35 = arith.constant 0 : index
    %c0_36 = arith.constant 0 : index
    %49 = vector.load %arg6[%c0_35, %c0_36] : memref<128x128xbf16, #tpu.memory_space<vmem>>, vector<128x128xbf16>
    %cst_37 = arith.constant dense<0.000000e+00> : vector<16x128xf32>
    %50 = tpu.matmul %48, %49, %cst_37 {dimension_numbers = #tpu.dot_dimension_numbers<[1], [0], [0], [1], [0, 0, 1, 1], [], []>} : vector<16x128xbf16>, vector<128x128xbf16>, vector<16x128xf32> -> vector<16x128xf32>
    %c0_38 = arith.constant 0 : index
    %c0_39 = arith.constant 0 : index
    %51 = vector.load %arg7[%c0_38, %c0_39] : memref<1x128xf32, #tpu.memory_space<vmem>>, vector<1x128xf32>
    %52 = vector.broadcast %51 : vector<1x128xf32> to vector<16x128xf32>
    %53 = arith.addf %50, %52 : vector<16x128xf32>
    %54 = arith.truncf %53 : vector<16x128xf32> to vector<16x128xbf16>
    %c0_40 = arith.constant 0 : index
    %c0_41 = arith.constant 0 : index
    %55 = vector.load %arg8[%c0_40, %c0_41] : memref<16x128xbf16, #tpu.memory_space<vmem>>, vector<16x128xbf16>
    tpu.vector_store %arg8[%c0_40, %c0_41], %54 {strides = array<i32>} : memref<16x128xbf16, #tpu.memory_space<vmem>>, vector<16x128xbf16>,
    return
  }
  func.func @transform_0(%arg0: i32) -> (i32, i32) {
    %c0_i32 = arith.constant 0 : i32
    %c0_i32_0 = arith.constant 0 : i32
    return %arg0, %c0_i32 : i32, i32
  }
  func.func @transform_1(%arg0: i32) -> (i32, i32) {
    %c0_i32 = arith.constant 0 : i32
    %c0_i32_0 = arith.constant 0 : i32
    %c0_i32_1 = arith.constant 0 : i32
    return %c0_i32, %c0_i32_0 : i32, i32
  }
  func.func @transform_2(%arg0: i32) -> (i32, i32) {
    %c0_i32 = arith.constant 0 : i32
    %c0_i32_0 = arith.constant 0 : i32
    %c0_i32_1 = arith.constant 0 : i32
    return %c0_i32, %c0_i32_0 : i32, i32
  }
  func.func @transform_3(%arg0: i32) -> (i32, i32, i32) {
    %c0_i32 = arith.constant 0 : i32
    %c0_i32_0 = arith.constant 0 : i32
    %c0_i32_1 = arith.constant 0 : i32
    %c0_i32_2 = arith.constant 0 : i32
    return %c0_i32, %c0_i32_0, %c0_i32_1 : i32, i32, i32
  }
  func.func @transform_4(%arg0: i32) -> (i32, i32, i32) {
    %c0_i32 = arith.constant 0 : i32
    %c0_i32_0 = arith.constant 0 : i32
    %c0_i32_1 = arith.constant 0 : i32
    %c0_i32_2 = arith.constant 0 : i32
    return %c0_i32, %c0_i32_0, %c0_i32_1 : i32, i32, i32
  }
  func.func @transform_5(%arg0: i32) -> (i32, i32) {
    %c0_i32 = arith.constant 0 : i32
    %c0_i32_0 = arith.constant 0 : i32
    %c0_i32_1 = arith.constant 0 : i32
    return %c0_i32, %c0_i32_0 : i32, i32
  }
  func.func @transform_6(%arg0: i32) -> (i32, i32) {
    %c0_i32 = arith.constant 0 : i32
    %c0_i32_0 = arith.constant 0 : i32
    %c0_i32_1 = arith.constant 0 : i32
    return %c0_i32, %c0_i32_0 : i32, i32
  }
  func.func @transform_7(%arg0: i32) -> (i32, i32) {
    %c0_i32 = arith.constant 0 : i32
    %c0_i32_0 = arith.constant 0 : i32
    return %arg0, %c0_i32 : i32, i32
  }
}

</mosaic_0001>

<llo_original>
// kernel: tpu_custom_call.1
$region0: #{tpu_custom_call.1}
  #allocation0 [shape = 'u32[]', space=smem, size = 0x4, offset = 0x4, fixed_abs, tag = 'smem constant byte address 0x4 - core index']
  #allocation1 [shape = 'u32[144,128]{1,0:T(1,128)}', space=vmem, size = 0x12000, scoped, tag = 'internal scratch']
  %s0 = inlined_call_operand.hbm [shape: bf16[16,128], index: 0, kind: input, shape index: {}]
  %s1 = inlined_call_operand.hbm [shape: bf16[128,128], index: 1, kind: input, shape index: {}]
  %s2 = inlined_call_operand.vmem [shape: f32[1,128], index: 2, kind: input, shape index: {}]
  %s3 = inlined_call_operand.hbm [shape: bf16[4,128,128], index: 3, kind: input, shape index: {}]
  %s4 = inlined_call_operand.vmem [shape: f32[4,1,128], index: 4, kind: input, shape index: {}]
  %s5 = inlined_call_operand.hbm [shape: bf16[128,128], index: 5, kind: input, shape index: {}]
  %s6 = inlined_call_operand.vmem [shape: f32[1,128], index: 6, kind: input, shape index: {}]
  %s7 = inlined_call_operand.hbm [shape: bf16[16,128], index: 7, kind: output, shape index: {}]
  %s8 = sld [smem:[#allocation0]]
  $region54: #{tpu_custom_call.1} parent=0
    _
  %s10 = ssub.s32 1, %s8
  %s11 = scalar_select 0, %s10, %s8
  $region1: #{tpu_custom_call.1} parent=0
    #allocation2 [shape = 'u8[4096]{0}', space=vmem, size = 0x1000, scoped, tag = 'input window, operand 0, single buffered']
    #allocation3 [shape = 's32[1]{0}', space=sflag, size = 0x4, scoped, tag = 'scoped memory for tpu_custom_call.1']
    #allocation4 [shape = 's32[1]{0}', space=sflag, size = 0x4, scoped, tag = 'scoped memory for tpu_custom_call.1']
    #allocation5 [shape = 'u8[32768]{0}', space=vmem, size = 0x8000, scoped, tag = 'input window, operand 1, single buffered']
    #allocation6 [shape = 's32[1]{0}', space=sflag, size = 0x4, scoped, tag = 'scoped memory for tpu_custom_call.1']
    #allocation7 [shape = 'u8[131072]{0}', space=vmem, size = 0x20000, scoped, tag = 'input window, operand 3, single buffered']
    #allocation8 [shape = 'u8[32768]{0}', space=vmem, size = 0x8000, scoped, tag = 'input window, operand 5, single buffered']
    #allocation9 [shape = 's32[1]{0}', space=sflag, size = 0x4, scoped, tag = 'scoped memory for tpu_custom_call.1']
    #allocation10 [shape = 'u8[4096]{0}', space=vmem, size = 0x1000, scoped, tag = 'output window, operand 0, single buffered']
    %12 = vsyncpa [#allocation3], 0
    %13 = vsyncpa [#allocation6], 0
    %14 = vsyncpa [#allocation9], 0
    %15 = vsyncpa [#allocation4], 0
    // Predicated region
    $region2: #{tpu_custom_call.1} parent=1 // pred_check
      _
    $region3: #{tpu_custom_call.1} parent=1 // pred_check_branch
      %17 = sbr.rel (0) target = $region5
    $region4: #{tpu_custom_call.1} parent=1 // pred_region
      %s19 = ssub.s32 128, 128
      %20 = vsyncadd [#allocation3], %s19
      %s21 = sshll.u32 [#allocation2], 4
      %s22 = int_to_ptr.vmem [resolvable:$true] %s21
      %27 = dma.hbm_to_vmem [thread:$0]  %s0, 128, %s22, [#allocation3], 64, 64, 4
    $region5: #{tpu_custom_call.1} parent=1 // pred_fallthru
      _
    // Predicated region
    $region6: #{tpu_custom_call.1} parent=1 // pred_check
      _
    $region7: #{tpu_custom_call.1} parent=1 // pred_check_branch
      %29 = sbr.rel (0) target = $region9
    $region8: #{tpu_custom_call.1} parent=1 // pred_region
      %s31 = ssub.s32 1024, 1024
      %32 = vsyncadd [#allocation6], %s31
      %s33 = sshll.u32 [#allocation5], 4
      %s34 = int_to_ptr.vmem [resolvable:$true] %s33
      %39 = dma.hbm_to_vmem [thread:$0]  %s1, 1024, %s34, [#allocation6], 64, 64, 4
    $region9: #{tpu_custom_call.1} parent=1 // pred_fallthru
      _
    // Predicated region
    $region10: #{tpu_custom_call.1} parent=1 // pred_check
      _
    $region11: #{tpu_custom_call.1} parent=1 // pred_check_branch
      %41 = sbr.rel (0) target = $region13
    $region12: #{tpu_custom_call.1} parent=1 // pred_region
      _
    $region13: #{tpu_custom_call.1} parent=1 // pred_fallthru
      _
    // Predicated region
    $region14: #{tpu_custom_call.1} parent=1 // pred_check
      _
    $region15: #{tpu_custom_call.1} parent=1 // pred_check_branch
      %43 = sbr.rel (0) target = $region17
    $region16: #{tpu_custom_call.1} parent=1 // pred_region
      %s45 = ssub.s32 4096, 4096
      %46 = vsyncadd [#allocation6], %s45
      %s47 = sshll.u32 [#allocation7], 4
      %s48 = int_to_ptr.vmem [resolvable:$true] %s47
      %53 = dma.hbm_to_vmem [thread:$0]  %s3, 4096, %s48, [#allocation6], 64, 64, 4
    $region17: #{tpu_custom_call.1} parent=1 // pred_fallthru
      _
    // Predicated region
    $region18: #{tpu_custom_call.1} parent=1 // pred_check
      _
    $region19: #{tpu_custom_call.1} parent=1 // pred_check_branch
      %55 = sbr.rel (0) target = $region21
    $region20: #{tpu_custom_call.1} parent=1 // pred_region
      _
    $region21: #{tpu_custom_call.1} parent=1 // pred_fallthru
      _
    // Predicated region
    $region22: #{tpu_custom_call.1} parent=1 // pred_check
      _
    $region23: #{tpu_custom_call.1} parent=1 // pred_check_branch
      %57 = sbr.rel (0) target = $region25
    $region24: #{tpu_custom_call.1} parent=1 // pred_region
      %s59 = ssub.s32 1024, 1024
      %60 = vsyncadd [#allocation9], %s59
      %s61 = sshll.u32 [#allocation8], 4
      %s62 = int_to_ptr.vmem [resolvable:$true] %s61
      %67 = dma.hbm_to_vmem [thread:$0]  %s5, 1024, %s62, [#allocation9], 64, 64, 4
    $region25: #{tpu_custom_call.1} parent=1 // pred_fallthru
      _
    // Predicated region
    $region26: #{tpu_custom_call.1} parent=1 // pred_check
      _
    $region27: #{tpu_custom_call.1} parent=1 // pred_check_branch
      %69 = sbr.rel (0) target = $region29
    $region28: #{tpu_custom_call.1} parent=1 // pred_region
      _
    $region29: #{tpu_custom_call.1} parent=1 // pred_fallthru
      _
    // Predicated region
    $region30: #{tpu_custom_call.1} parent=1 // pred_check
      _
    $region31: #{tpu_custom_call.1} parent=1 // pred_check_branch
      %71 = sbr.rel (0) target = $region33
    $region32: #{tpu_custom_call.1} parent=1 // pred_region
      %72 = dma.done [#allocation3], 128
    $region33: #{tpu_custom_call.1} parent=1 // pred_fallthru
      _
    // Predicated region
    $region34: #{tpu_custom_call.1} parent=1 // pred_check
      _
    $region35: #{tpu_custom_call.1} parent=1 // pred_check_branch
      %74 = sbr.rel (0) target = $region37
    $region36: #{tpu_custom_call.1} parent=1 // pred_region
      %75 = dma.done [#allocation6], 1024
    $region37: #{tpu_custom_call.1} parent=1 // pred_fallthru
      _
    // Predicated region
    $region38: #{tpu_custom_call.1} parent=1 // pred_check
      _
    $region39: #{tpu_custom_call.1} parent=1 // pred_check_branch
      %77 = sbr.rel (0) target = $region41
    $region40: #{tpu_custom_call.1} parent=1 // pred_region
      %78 = dma.done [#allocation6], 4096
    $region41: #{tpu_custom_call.1} parent=1 // pred_fallthru
      _
    // Predicated region
    $region42: #{tpu_custom_call.1} parent=1 // pred_check
      _
    $region43: #{tpu_custom_call.1} parent=1 // pred_check_branch
      %80 = sbr.rel (0) target = $region45
    $region44: #{tpu_custom_call.1} parent=1 // pred_region
      %81 = dma.done [#allocation9], 1024
    $region45: #{tpu_custom_call.1} parent=1 // pred_fallthru
      _
    %v83 = vld [vmem:[#allocation2] sm:$0xf]
    %v84 = vld [vmem:[#allocation2 + $0x4] sm:$0xf]
    %v85 = vld [vmem:[#allocation5] sm:$0xf]
    %v86 = vld [vmem:[#allocation5 + $0x4] sm:$0xf]
    %v87 = vld [vmem:[#allocation5 + $0x8] sm:$0xf]
    %v88 = vld [vmem:[#allocation5 + $0xc] sm:$0xf]
    %v89 = vld [vmem:[#allocation5 + $0x10] sm:$0xf]
    %v90 = vld [vmem:[#allocation5 + $0x14] sm:$0xf]
    %v91 = vld [vmem:[#allocation5 + $0x18] sm:$0xf]
    %v92 = vld [vmem:[#allocation5 + $0x1c] sm:$0xf]
    %v93 = vld [vmem:[#allocation5 + $0x20] sm:$0xf]
    %v94 = vld [vmem:[#allocation5 + $0x24] sm:$0xf]
    %v95 = vld [vmem:[#allocation5 + $0x28] sm:$0xf]
    %v96 = vld [vmem:[#allocation5 + $0x2c] sm:$0xf]
    %v97 = vld [vmem:[#allocation5 + $0x30] sm:$0xf]
    %v98 = vld [vmem:[#allocation5 + $0x34] sm:$0xf]
    %v99 = vld [vmem:[#allocation5 + $0x38] sm:$0xf]
    %v100 = vld [vmem:[#allocation5 + $0x3c] sm:$0xf]
    %v101 = vld [vmem:[%s2] sm:$0x1]
    %v103 = vlaneseq
    %v104 = vshrl.u32 %v103, 7
    %v105 = vsub.s32 0, %v104
    %v106 = vrot.slane %v101, %v105
    %v110 = vunpack.c.l.b16 %v83
    %v111 = vunpack.c.l.b16 %v84
    %v112 = vpack.c.b16 %v111, %v110
    %v130 = vunpack.c.l.b16 %v85
    %v131 = vunpack.c.l.b16 %v86
    %v132 = vunpack.c.l.b16 %v87
    %v133 = vunpack.c.l.b16 %v88
    %v134 = vunpack.c.l.b16 %v89
    %v135 = vunpack.c.l.b16 %v90
    %v136 = vunpack.c.l.b16 %v91
    %v137 = vunpack.c.l.b16 %v92
    %v138 = vunpack.c.l.b16 %v93
    %v139 = vunpack.c.l.b16 %v94
    %v140 = vunpack.c.l.b16 %v95
    %v141 = vunpack.c.l.b16 %v96
    %v142 = vunpack.c.l.b16 %v97
    %v143 = vunpack.c.l.b16 %v98
    %v144 = vunpack.c.l.b16 %v99
    %v145 = vunpack.c.l.b16 %v100
    %v146 = vpack.c.b16 %v131, %v130
    %v147 = vpack.c.b16 %v133, %v132
    %v148 = vpack.c.b16 %v135, %v134
    %v149 = vpack.c.b16 %v137, %v136
    %v150 = vpack.c.b16 %v139, %v138
    %v151 = vpack.c.b16 %v141, %v140
    %v152 = vpack.c.b16 %v143, %v142
    %v153 = vpack.c.b16 %v145, %v144
    %162 = vmatprep.subr.bf16.mxu0 0
    %163 = vmatpush1.bf16.msra.mxu0 %v146
    %164 = vmatprep.subr.bf16.mxu0 0
    %165 = vmatpush1.bf16.msra.mxu0 %v147
    %166 = vmatprep.subr.bf16.mxu0 0
    %167 = vmatpush1.bf16.msra.mxu0 %v148
    %168 = vmatprep.subr.bf16.mxu0 0
    %169 = vmatpush1.bf16.msra.mxu0 %v149
    %170 = vmatprep.subr.bf16.mxu0 0
    %171 = vmatpush1.bf16.msra.mxu0 %v150
    %172 = vmatprep.subr.bf16.mxu0 0
    %173 = vmatpush1.bf16.msra.mxu0 %v151
    %174 = vmatprep.subr.bf16.mxu0 0
    %175 = vmatpush1.bf16.msra.mxu0 %v152
    %176 = vmatprep.subr.bf16.mxu0 0
    %177 = vmatpush1.bf16.msra.mxu0 %v153
    %178 = vmatprep.subr.bf16.mxu0 0
    %179 = vmatpush1.bf16.msra.mxu0 0
    %180 = vmatprep.subr.bf16.mxu0 0
    %181 = vmatpush1.bf16.msra.mxu0 0
    %182 = vmatprep.subr.bf16.mxu0 0
    %183 = vmatpush1.bf16.msra.mxu0 0
    %184 = vmatprep.subr.bf16.mxu0 0
    %185 = vmatpush1.bf16.msra.mxu0 0
    %186 = vmatprep.subr.bf16.mxu0 0
    %187 = vmatpush1.bf16.msra.mxu0 0
    %188 = vmatprep.subr.bf16.mxu0 0
    %189 = vmatpush1.bf16.msra.mxu0 0
    %190 = vmatprep.subr.bf16.mxu0 0
    %191 = vmatpush1.bf16.msra.mxu0 0
    %192 = vmatprep.subr.bf16.mxu0 0
    %193 = vmatpush1.bf16.msra.mxu0 0
    %194 = vmatprep.mubr.bf16.mxu0 0
    %195 = vmatmul.mubr.bf16.gmra.mrb[0].mxu0 %v112
    %v196 = vpop.f32.mrb[0].mxu0
    %v197 = vadd.f32 %v106, %v196
    %v198 = vpop.f32.mrb[0].mxu0
    %v199 = vpop.f32.mrb[0].mxu0
    %v200 = vadd.f32 %v106, %v199
    %v201 = vpop.f32.mrb[0].mxu0
    %202 = vdwg.mxu0
    %v203 = vmax.f32 %v197, 0.0
    %v204 = vmax.f32 %v200, 0.0
    %v205 = vpack.c.bf16 %v204, %v203
    %v206 = vld [vmem:[#allocation7] sm:$0xf]
    %v207 = vld [vmem:[#allocation7 + $0x4] sm:$0xf]
    %v208 = vld [vmem:[#allocation7 + $0x8] sm:$0xf]
    %v209 = vld [vmem:[#allocation7 + $0xc] sm:$0xf]
    %v210 = vld [vmem:[#allocation7 + $0x10] sm:$0xf]
    %v211 = vld [vmem:[#allocation7 + $0x14] sm:$0xf]
    %v212 = vld [vmem:[#allocation7 + $0x18] sm:$0xf]
    %v213 = vld [vmem:[#allocation7 + $0x1c] sm:$0xf]
    %v214 = vld [vmem:[#allocation7 + $0x20] sm:$0xf]
    %v215 = vld [vmem:[#allocation7 + $0x24] sm:$0xf]
    %v216 = vld [vmem:[#allocation7 + $0x28] sm:$0xf]
    %v217 = vld [vmem:[#allocation7 + $0x2c] sm:$0xf]
    %v218 = vld [vmem:[#allocation7 + $0x30] sm:$0xf]
    %v219 = vld [vmem:[#allocation7 + $0x34] sm:$0xf]
    %v220 = vld [vmem:[#allocation7 + $0x38] sm:$0xf]
    %v221 = vld [vmem:[#allocation7 + $0x3c] sm:$0xf]
    %v222 = vld [vmem:[%s4] sm:$0x1]
    %v224 = vlaneseq
    %v225 = vshrl.u32 %v224, 7
    %v226 = vsub.s32 0, %v225
    %v227 = vrot.slane %v222, %v226
    %v245 = vunpack.c.l.b16 %v206
    %v246 = vunpack.c.l.b16 %v207
    %v247 = vunpack.c.l.b16 %v208
    %v248 = vunpack.c.l.b16 %v209
    %v249 = vunpack.c.l.b16 %v210
    %v250 = vunpack.c.l.b16 %v211
    %v251 = vunpack.c.l.b16 %v212
    %v252 = vunpack.c.l.b16 %v213
    %v253 = vunpack.c.l.b16 %v214
    %v254 = vunpack.c.l.b16 %v215
    %v255 = vunpack.c.l.b16 %v216
    %v256 = vunpack.c.l.b16 %v217
    %v257 = vunpack.c.l.b16 %v218
    %v258 = vunpack.c.l.b16 %v219
    %v259 = vunpack.c.l.b16 %v220
    %v260 = vunpack.c.l.b16 %v221
    %v261 = vpack.c.b16 %v246, %v245
    %v262 = vpack.c.b16 %v248, %v247
    %v263 = vpack.c.b16 %v250, %v249
    %v264 = vpack.c.b16 %v252, %v251
    %v265 = vpack.c.b16 %v254, %v253
    %v266 = vpack.c.b16 %v256, %v255
    %v267 = vpack.c.b16 %v258, %v257
    %v268 = vpack.c.b16 %v260, %v259
    %277 = vmatprep.subr.bf16.mxu0 0
    %278 = vmatpush1.bf16.msra.mxu0 %v261
    %279 = vmatprep.subr.bf16.mxu0 0
    %280 = vmatpush1.bf16.msra.mxu0 %v262
    %281 = vmatprep.subr.bf16.mxu0 0
    %282 = vmatpush1.bf16.msra.mxu0 %v263
    %283 = vmatprep.subr.bf16.mxu0 0
    %284 = vmatpush1.bf16.msra.mxu0 %v264
    %285 = vmatprep.subr.bf16.mxu0 0
    %286 = vmatpush1.bf16.msra.mxu0 %v265
    %287 = vmatprep.subr.bf16.mxu0 0
    %288 = vmatpush1.bf16.msra.mxu0 %v266
    %289 = vmatprep.subr.bf16.mxu0 0
    %290 = vmatpush1.bf16.msra.mxu0 %v267
    %291 = vmatprep.subr.bf16.mxu0 0
    %292 = vmatpush1.bf16.msra.mxu0 %v268
    %293 = vmatprep.subr.bf16.mxu0 0
    %294 = vmatpush1.bf16.msra.mxu0 0
    %295 = vmatprep.subr.bf16.mxu0 0
    %296 = vmatpush1.bf16.msra.mxu0 0
    %297 = vmatprep.subr.bf16.mxu0 0
    %298 = vmatpush1.bf16.msra.mxu0 0
    %299 = vmatprep.subr.bf16.mxu0 0
    %300 = vmatpush1.bf16.msra.mxu0 0
    %301 = vmatprep.subr.bf16.mxu0 0
    %302 = vmatpush1.bf16.msra.mxu0 0
    %303 = vmatprep.subr.bf16.mxu0 0
    %304 = vmatpush1.bf16.msra.mxu0 0
    %305 = vmatprep.subr.bf16.mxu0 0
    %306 = vmatpush1.bf16.msra.mxu0 0
    %307 = vmatprep.subr.bf16.mxu0 0
    %308 = vmatpush1.bf16.msra.mxu0 0
    %309 = vmatprep.mubr.bf16.mxu0 0
    %310 = vmatmul.mubr.bf16.gmra.mrb[0].mxu0 %v205
    %v311 = vpop.f32.mrb[0].mxu0
    %v312 = vadd.f32 %v227, %v311
    %v313 = vpop.f32.mrb[0].mxu0
    %v314 = vpop.f32.mrb[0].mxu0
    %v315 = vadd.f32 %v227, %v314
    %v316 = vpop.f32.mrb[0].mxu0
    %317 = vdwg.mxu0
    %v318 = vmax.f32 %v312, 0.0
    %v319 = vmax.f32 %v315, 0.0
    %v320 = vpack.c.bf16 %v319, %v318
    %s321 = scalar_lea.vmem [#allocation7], 64
    %v322 = vld [vmem:[%s321] sm:$0xf]
    %v323 = vld [vmem:[%s321 + $0x4] sm:$0xf]
    %v324 = vld [vmem:[%s321 + $0x8] sm:$0xf]
    %v325 = vld [vmem:[%s321 + $0xc] sm:$0xf]
    %v326 = vld [vmem:[%s321 + $0x10] sm:$0xf]
    %v327 = vld [vmem:[%s321 + $0x14] sm:$0xf]
    %v328 = vld [vmem:[%s321 + $0x18] sm:$0xf]
    %v329 = vld [vmem:[%s321 + $0x1c] sm:$0xf]
    %v330 = vld [vmem:[%s321 + $0x20] sm:$0xf]
    %v331 = vld [vmem:[%s321 + $0x24] sm:$0xf]
    %v332 = vld [vmem:[%s321 + $0x28] sm:$0xf]
    %v333 = vld [vmem:[%s321 + $0x2c] sm:$0xf]
    %v334 = vld [vmem:[%s321 + $0x30] sm:$0xf]
    %v335 = vld [vmem:[%s321 + $0x34] sm:$0xf]
    %v336 = vld [vmem:[%s321 + $0x38] sm:$0xf]
    %v337 = vld [vmem:[%s321 + $0x3c] sm:$0xf]
    %s338 = scalar_lea.vmem %s4, 1
    %v339 = vld [vmem:[%s338] sm:$0x1]
    %v341 = vlaneseq
    %v342 = vshrl.u32 %v341, 7
    %v343 = vsub.s32 0, %v342
    %v344 = vrot.slane %v339, %v343
    %v362 = vunpack.c.l.b16 %v322
    %v363 = vunpack.c.l.b16 %v323
    %v364 = vunpack.c.l.b16 %v324
    %v365 = vunpack.c.l.b16 %v325
    %v366 = vunpack.c.l.b16 %v326
    %v367 = vunpack.c.l.b16 %v327
    %v368 = vunpack.c.l.b16 %v328
    %v369 = vunpack.c.l.b16 %v329
    %v370 = vunpack.c.l.b16 %v330
    %v371 = vunpack.c.l.b16 %v331
    %v372 = vunpack.c.l.b16 %v332
    %v373 = vunpack.c.l.b16 %v333
    %v374 = vunpack.c.l.b16 %v334
    %v375 = vunpack.c.l.b16 %v335
    %v376 = vunpack.c.l.b16 %v336
    %v377 = vunpack.c.l.b16 %v337
    %v378 = vpack.c.b16 %v363, %v362
    %v379 = vpack.c.b16 %v365, %v364
    %v380 = vpack.c.b16 %v367, %v366
    %v381 = vpack.c.b16 %v369, %v368
    %v382 = vpack.c.b16 %v371, %v370
    %v383 = vpack.c.b16 %v373, %v372
    %v384 = vpack.c.b16 %v375, %v374
    %v385 = vpack.c.b16 %v377, %v376
    %394 = vmatprep.subr.bf16.mxu0 0
    %395 = vmatpush1.bf16.msra.mxu0 %v378
    %396 = vmatprep.subr.bf16.mxu0 0
    %397 = vmatpush1.bf16.msra.mxu0 %v379
    %398 = vmatprep.subr.bf16.mxu0 0
    %399 = vmatpush1.bf16.msra.mxu0 %v380
    %400 = vmatprep.subr.bf16.mxu0 0
    %401 = vmatpush1.bf16.msra.mxu0 %v381
    %402 = vmatprep.subr.bf16.mxu0 0
    %403 = vmatpush1.bf16.msra.mxu0 %v382
    %404 = vmatprep.subr.bf16.mxu0 0
    %405 = vmatpush1.bf16.msra.mxu0 %v383
    %406 = vmatprep.subr.bf16.mxu0 0
    %407 = vmatpush1.bf16.msra.mxu0 %v384
    %408 = vmatprep.subr.bf16.mxu0 0
    %409 = vmatpush1.bf16.msra.mxu0 %v385
    %410 = vmatprep.subr.bf16.mxu0 0
    %411 = vmatpush1.bf16.msra.mxu0 0
    %412 = vmatprep.subr.bf16.mxu0 0
    %413 = vmatpush1.bf16.msra.mxu0 0
    %414 = vmatprep.subr.bf16.mxu0 0
    %415 = vmatpush1.bf16.msra.mxu0 0
    %416 = vmatprep.subr.bf16.mxu0 0
    %417 = vmatpush1.bf16.msra.mxu0 0
    %418 = vmatprep.subr.bf16.mxu0 0
    %419 = vmatpush1.bf16.msra.mxu0 0
    %420 = vmatprep.subr.bf16.mxu0 0
    %421 = vmatpush1.bf16.msra.mxu0 0
    %422 = vmatprep.subr.bf16.mxu0 0
    %423 = vmatpush1.bf16.msra.mxu0 0
    %424 = vmatprep.subr.bf16.mxu0 0
    %425 = vmatpush1.bf16.msra.mxu0 0
    %426 = vmatprep.mubr.bf16.mxu0 0
    %427 = vmatmul.mubr.bf16.gmra.mrb[0].mxu0 %v320
    %v428 = vpop.f32.mrb[0].mxu0
    %v429 = vadd.f32 %v344, %v428
    %v430 = vpop.f32.mrb[0].mxu0
    %v431 = vpop.f32.mrb[0].mxu0
    %v432 = vadd.f32 %v344, %v431
    %v433 = vpop.f32.mrb[0].mxu0
    %434 = vdwg.mxu0
    %v435 = vmax.f32 %v429, 0.0
    %v436 = vmax.f32 %v432, 0.0
    %v437 = vpack.c.bf16 %v436, %v435
    %s438 = scalar_lea.vmem [#allocation7], 128
    %v439 = vld [vmem:[%s438] sm:$0xf]
    %v440 = vld [vmem:[%s438 + $0x4] sm:$0xf]
    %v441 = vld [vmem:[%s438 + $0x8] sm:$0xf]
    %v442 = vld [vmem:[%s438 + $0xc] sm:$0xf]
    %v443 = vld [vmem:[%s438 + $0x10] sm:$0xf]
    %v444 = vld [vmem:[%s438 + $0x14] sm:$0xf]
    %v445 = vld [vmem:[%s438 + $0x18] sm:$0xf]
    %v446 = vld [vmem:[%s438 + $0x1c] sm:$0xf]
    %v447 = vld [vmem:[%s438 + $0x20] sm:$0xf]
    %v448 = vld [vmem:[%s438 + $0x24] sm:$0xf]
    %v449 = vld [vmem:[%s438 + $0x28] sm:$0xf]
    %v450 = vld [vmem:[%s438 + $0x2c] sm:$0xf]
    %v451 = vld [vmem:[%s438 + $0x30] sm:$0xf]
    %v452 = vld [vmem:[%s438 + $0x34] sm:$0xf]
    %v453 = vld [vmem:[%s438 + $0x38] sm:$0xf]
    %v454 = vld [vmem:[%s438 + $0x3c] sm:$0xf]
    %s455 = scalar_lea.vmem %s4, 2
    %v456 = vld [vmem:[%s455] sm:$0x1]
    %v458 = vlaneseq
    %v459 = vshrl.u32 %v458, 7
    %v460 = vsub.s32 0, %v459
    %v461 = vrot.slane %v456, %v460
    %v479 = vunpack.c.l.b16 %v439
    %v480 = vunpack.c.l.b16 %v440
    %v481 = vunpack.c.l.b16 %v441
    %v482 = vunpack.c.l.b16 %v442
    %v483 = vunpack.c.l.b16 %v443
    %v484 = vunpack.c.l.b16 %v444
    %v485 = vunpack.c.l.b16 %v445
    %v486 = vunpack.c.l.b16 %v446
    %v487 = vunpack.c.l.b16 %v447
    %v488 = vunpack.c.l.b16 %v448
    %v489 = vunpack.c.l.b16 %v449
    %v490 = vunpack.c.l.b16 %v450
    %v491 = vunpack.c.l.b16 %v451
    %v492 = vunpack.c.l.b16 %v452
    %v493 = vunpack.c.l.b16 %v453
    %v494 = vunpack.c.l.b16 %v454
    %v495 = vpack.c.b16 %v480, %v479
    %v496 = vpack.c.b16 %v482, %v481
    %v497 = vpack.c.b16 %v484, %v483
    %v498 = vpack.c.b16 %v486, %v485
    %v499 = vpack.c.b16 %v488, %v487
    %v500 = vpack.c.b16 %v490, %v489
    %v501 = vpack.c.b16 %v492, %v491
    %v502 = vpack.c.b16 %v494, %v493
    %511 = vmatprep.subr.bf16.mxu0 0
    %512 = vmatpush1.bf16.msra.mxu0 %v495
    %513 = vmatprep.subr.bf16.mxu0 0
    %514 = vmatpush1.bf16.msra.mxu0 %v496
    %515 = vmatprep.subr.bf16.mxu0 0
    %516 = vmatpush1.bf16.msra.mxu0 %v497
    %517 = vmatprep.subr.bf16.mxu0 0
    %518 = vmatpush1.bf16.msra.mxu0 %v498
    %519 = vmatprep.subr.bf16.mxu0 0
    %520 = vmatpush1.bf16.msra.mxu0 %v499
    %521 = vmatprep.subr.bf16.mxu0 0
    %522 = vmatpush1.bf16.msra.mxu0 %v500
    %523 = vmatprep.subr.bf16.mxu0 0
    %524 = vmatpush1.bf16.msra.mxu0 %v501
    %525 = vmatprep.subr.bf16.mxu0 0
    %526 = vmatpush1.bf16.msra.mxu0 %v502
    %527 = vmatprep.subr.bf16.mxu0 0
    %528 = vmatpush1.bf16.msra.mxu0 0
    %529 = vmatprep.subr.bf16.mxu0 0
    %530 = vmatpush1.bf16.msra.mxu0 0
    %531 = vmatprep.subr.bf16.mxu0 0
    %532 = vmatpush1.bf16.msra.mxu0 0
    %533 = vmatprep.subr.bf16.mxu0 0
    %534 = vmatpush1.bf16.msra.mxu0 0
    %535 = vmatprep.subr.bf16.mxu0 0
    %536 = vmatpush1.bf16.msra.mxu0 0
    %537 = vmatprep.subr.bf16.mxu0 0
    %538 = vmatpush1.bf16.msra.mxu0 0
    %539 = vmatprep.subr.bf16.mxu0 0
    %540 = vmatpush1.bf16.msra.mxu0 0
    %541 = vmatprep.subr.bf16.mxu0 0
    %542 = vmatpush1.bf16.msra.mxu0 0
    %543 = vmatprep.mubr.bf16.mxu0 0
    %544 = vmatmul.mubr.bf16.gmra.mrb[0].mxu0 %v437
    %v545 = vpop.f32.mrb[0].mxu0
    %v546 = vadd.f32 %v461, %v545
    %v547 = vpop.f32.mrb[0].mxu0
    %v548 = vpop.f32.mrb[0].mxu0
    %v549 = vadd.f32 %v461, %v548
    %v550 = vpop.f32.mrb[0].mxu0
    %551 = vdwg.mxu0
    %v552 = vmax.f32 %v546, 0.0
    %v553 = vmax.f32 %v549, 0.0
    %v554 = vpack.c.bf16 %v553, %v552
    %s555 = scalar_lea.vmem [#allocation7], 192
    %v556 = vld [vmem:[%s555] sm:$0xf]
    %v557 = vld [vmem:[%s555 + $0x4] sm:$0xf]
    %v558 = vld [vmem:[%s555 + $0x8] sm:$0xf]
    %v559 = vld [vmem:[%s555 + $0xc] sm:$0xf]
    %v560 = vld [vmem:[%s555 + $0x10] sm:$0xf]
    %v561 = vld [vmem:[%s555 + $0x14] sm:$0xf]
    %v562 = vld [vmem:[%s555 + $0x18] sm:$0xf]
    %v563 = vld [vmem:[%s555 + $0x1c] sm:$0xf]
    %v564 = vld [vmem:[%s555 + $0x20] sm:$0xf]
    %v565 = vld [vmem:[%s555 + $0x24] sm:$0xf]
    %v566 = vld [vmem:[%s555 + $0x28] sm:$0xf]
    %v567 = vld [vmem:[%s555 + $0x2c] sm:$0xf]
    %v568 = vld [vmem:[%s555 + $0x30] sm:$0xf]
    %v569 = vld [vmem:[%s555 + $0x34] sm:$0xf]
    %v570 = vld [vmem:[%s555 + $0x38] sm:$0xf]
    %v571 = vld [vmem:[%s555 + $0x3c] sm:$0xf]
    %s572 = scalar_lea.vmem %s4, 3
    %v573 = vld [vmem:[%s572] sm:$0x1]
    %v575 = vlaneseq
    %v576 = vshrl.u32 %v575, 7
    %v577 = vsub.s32 0, %v576
    %v578 = vrot.slane %v573, %v577
    %v596 = vunpack.c.l.b16 %v556
    %v597 = vunpack.c.l.b16 %v557
    %v598 = vunpack.c.l.b16 %v558
    %v599 = vunpack.c.l.b16 %v559
    %v600 = vunpack.c.l.b16 %v560
    %v601 = vunpack.c.l.b16 %v561
    %v602 = vunpack.c.l.b16 %v562
    %v603 = vunpack.c.l.b16 %v563
    %v604 = vunpack.c.l.b16 %v564
    %v605 = vunpack.c.l.b16 %v565
    %v606 = vunpack.c.l.b16 %v566
    %v607 = vunpack.c.l.b16 %v567
    %v608 = vunpack.c.l.b16 %v568
    %v609 = vunpack.c.l.b16 %v569
    %v610 = vunpack.c.l.b16 %v570
    %v611 = vunpack.c.l.b16 %v571
    %v612 = vpack.c.b16 %v597, %v596
    %v613 = vpack.c.b16 %v599, %v598
    %v614 = vpack.c.b16 %v601, %v600
    %v615 = vpack.c.b16 %v603, %v602
    %v616 = vpack.c.b16 %v605, %v604
    %v617 = vpack.c.b16 %v607, %v606
    %v618 = vpack.c.b16 %v609, %v608
    %v619 = vpack.c.b16 %v611, %v610
    %628 = vmatprep.subr.bf16.mxu0 0
    %629 = vmatpush1.bf16.msra.mxu0 %v612
    %630 = vmatprep.subr.bf16.mxu0 0
    %631 = vmatpush1.bf16.msra.mxu0 %v613
    %632 = vmatprep.subr.bf16.mxu0 0
    %633 = vmatpush1.bf16.msra.mxu0 %v614
    %634 = vmatprep.subr.bf16.mxu0 0
    %635 = vmatpush1.bf16.msra.mxu0 %v615
    %636 = vmatprep.subr.bf16.mxu0 0
    %637 = vmatpush1.bf16.msra.mxu0 %v616
    %638 = vmatprep.subr.bf16.mxu0 0
    %639 = vmatpush1.bf16.msra.mxu0 %v617
    %640 = vmatprep.subr.bf16.mxu0 0
    %641 = vmatpush1.bf16.msra.mxu0 %v618
    %642 = vmatprep.subr.bf16.mxu0 0
    %643 = vmatpush1.bf16.msra.mxu0 %v619
    %644 = vmatprep.subr.bf16.mxu0 0
    %645 = vmatpush1.bf16.msra.mxu0 0
    %646 = vmatprep.subr.bf16.mxu0 0
    %647 = vmatpush1.bf16.msra.mxu0 0
    %648 = vmatprep.subr.bf16.mxu0 0
    %649 = vmatpush1.bf16.msra.mxu0 0
    %650 = vmatprep.subr.bf16.mxu0 0
    %651 = vmatpush1.bf16.msra.mxu0 0
    %652 = vmatprep.subr.bf16.mxu0 0
    %653 = vmatpush1.bf16.msra.mxu0 0
    %654 = vmatprep.subr.bf16.mxu0 0
    %655 = vmatpush1.bf16.msra.mxu0 0
    %656 = vmatprep.subr.bf16.mxu0 0
    %657 = vmatpush1.bf16.msra.mxu0 0
    %658 = vmatprep.subr.bf16.mxu0 0
    %659 = vmatpush1.bf16.msra.mxu0 0
    %660 = vmatprep.mubr.bf16.mxu0 0
    %661 = vmatmul.mubr.bf16.gmra.mrb[0].mxu0 %v554
    %v662 = vpop.f32.mrb[0].mxu0
    %v663 = vadd.f32 %v578, %v662
    %v664 = vpop.f32.mrb[0].mxu0
    %v665 = vpop.f32.mrb[0].mxu0
    %v666 = vadd.f32 %v578, %v665
    %v667 = vpop.f32.mrb[0].mxu0
    %668 = vdwg.mxu0
    %v669 = vmax.f32 %v663, 0.0
    %v670 = vmax.f32 %v666, 0.0
    %v671 = vpack.c.bf16 %v670, %v669
    %v672 = vld [vmem:[#allocation8] sm:$0xf]
    %v673 = vld [vmem:[#allocation8 + $0x4] sm:$0xf]
    %v674 = vld [vmem:[#allocation8 + $0x8] sm:$0xf]
    %v675 = vld [vmem:[#allocation8 + $0xc] sm:$0xf]
    %v676 = vld [vmem:[#allocation8 + $0x10] sm:$0xf]
    %v677 = vld [vmem:[#allocation8 + $0x14] sm:$0xf]
    %v678 = vld [vmem:[#allocation8 + $0x18] sm:$0xf]
    %v679 = vld [vmem:[#allocation8 + $0x1c] sm:$0xf]
    %v680 = vld [vmem:[#allocation8 + $0x20] sm:$0xf]
    %v681 = vld [vmem:[#allocation8 + $0x24] sm:$0xf]
    %v682 = vld [vmem:[#allocation8 + $0x28] sm:$0xf]
    %v683 = vld [vmem:[#allocation8 + $0x2c] sm:$0xf]
    %v684 = vld [vmem:[#allocation8 + $0x30] sm:$0xf]
    %v685 = vld [vmem:[#allocation8 + $0x34] sm:$0xf]
    %v686 = vld [vmem:[#allocation8 + $0x38] sm:$0xf]
    %v687 = vld [vmem:[#allocation8 + $0x3c] sm:$0xf]
    %v688 = vld [vmem:[%s6] sm:$0x1]
    %v690 = vlaneseq
    %v691 = vshrl.u32 %v690, 7
    %v692 = vsub.s32 0, %v691
    %v693 = vrot.slane %v688, %v692
    %v711 = vunpack.c.l.b16 %v672
    %v712 = vunpack.c.l.b16 %v673
    %v713 = vunpack.c.l.b16 %v674
    %v714 = vunpack.c.l.b16 %v675
    %v715 = vunpack.c.l.b16 %v676
    %v716 = vunpack.c.l.b16 %v677
    %v717 = vunpack.c.l.b16 %v678
    %v718 = vunpack.c.l.b16 %v679
    %v719 = vunpack.c.l.b16 %v680
    %v720 = vunpack.c.l.b16 %v681
    %v721 = vunpack.c.l.b16 %v682
    %v722 = vunpack.c.l.b16 %v683
    %v723 = vunpack.c.l.b16 %v684
    %v724 = vunpack.c.l.b16 %v685
    %v725 = vunpack.c.l.b16 %v686
    %v726 = vunpack.c.l.b16 %v687
    %v727 = vpack.c.b16 %v712, %v711
    %v728 = vpack.c.b16 %v714, %v713
    %v729 = vpack.c.b16 %v716, %v715
    %v730 = vpack.c.b16 %v718, %v717
    %v731 = vpack.c.b16 %v720, %v719
    %v732 = vpack.c.b16 %v722, %v721
    %v733 = vpack.c.b16 %v724, %v723
    %v734 = vpack.c.b16 %v726, %v725
    %743 = vmatprep.subr.bf16.mxu0 0
    %744 = vmatpush1.bf16.msra.mxu0 %v727
    %745 = vmatprep.subr.bf16.mxu0 0
    %746 = vmatpush1.bf16.msra.mxu0 %v728
    %747 = vmatprep.subr.bf16.mxu0 0
    %748 = vmatpush1.bf16.msra.mxu0 %v729
    %749 = vmatprep.subr.bf16.mxu0 0
    %750 = vmatpush1.bf16.msra.mxu0 %v730
    %751 = vmatprep.subr.bf16.mxu0 0
    %752 = vmatpush1.bf16.msra.mxu0 %v731
    %753 = vmatprep.subr.bf16.mxu0 0
    %754 = vmatpush1.bf16.msra.mxu0 %v732
    %755 = vmatprep.subr.bf16.mxu0 0
    %756 = vmatpush1.bf16.msra.mxu0 %v733
    %757 = vmatprep.subr.bf16.mxu0 0
    %758 = vmatpush1.bf16.msra.mxu0 %v734
    %759 = vmatprep.subr.bf16.mxu0 0
    %760 = vmatpush1.bf16.msra.mxu0 0
    %761 = vmatprep.subr.bf16.mxu0 0
    %762 = vmatpush1.bf16.msra.mxu0 0
    %763 = vmatprep.subr.bf16.mxu0 0
    %764 = vmatpush1.bf16.msra.mxu0 0
    %765 = vmatprep.subr.bf16.mxu0 0
    %766 = vmatpush1.bf16.msra.mxu0 0
    %767 = vmatprep.subr.bf16.mxu0 0
    %768 = vmatpush1.bf16.msra.mxu0 0
    %769 = vmatprep.subr.bf16.mxu0 0
    %770 = vmatpush1.bf16.msra.mxu0 0
    %771 = vmatprep.subr.bf16.mxu0 0
    %772 = vmatpush1.bf16.msra.mxu0 0
    %773 = vmatprep.subr.bf16.mxu0 0
    %774 = vmatpush1.bf16.msra.mxu0 0
    %775 = vmatprep.mubr.bf16.mxu0 0
    %776 = vmatmul.mubr.bf16.gmra.mrb[0].mxu0 %v671
    %v777 = vpop.f32.mrb[0].mxu0
    %v778 = vadd.f32 %v693, %v777
    %v779 = vpop.f32.mrb[0].mxu0
    %v780 = vpop.f32.mrb[0].mxu0
    %v781 = vadd.f32 %v693, %v780
    %v782 = vpop.f32.mrb[0].mxu0
    %783 = vdwg.mxu0
    %v784 = vpack.c.bf16 %v781, %v778
    %v786 = vunpack.c.l.b16 %v784
    %v787 = vunpack.c.h.b16 %v784
    %v788 = vpack.c.b16 %v786, %v786
    %v789 = vpack.c.b16 %v787, %v787
    %792 = vst [vmem:[#allocation10] sm:$0xf] %v788
    %793 = vst [vmem:[#allocation10 + $0x4] sm:$0xf] %v789
    // Predicated region
    $region46: #{tpu_custom_call.1} parent=1 // pred_check
      _
    $region47: #{tpu_custom_call.1} parent=1 // pred_check_branch
      %795 = sbr.rel (0) target = $region49
    $region48: #{tpu_custom_call.1} parent=1 // pred_region
      %s797 = ssub.s32 128, 128
      %798 = vsyncadd [#allocation4], %s797
      %s799 = sshll.u32 [#allocation10], 4
      %s800 = int_to_ptr.vmem [resolvable:$true] %s799
      %805 = dma.vmem_to_hbm [thread:$0]  %s800, 128, %s7, [#allocation4], 64, 64, 4
    $region49: #{tpu_custom_call.1} parent=1 // pred_fallthru
      _
    // Predicated region
    $region50: #{tpu_custom_call.1} parent=1 // pred_check
      _
    $region51: #{tpu_custom_call.1} parent=1 // pred_check_branch
      %807 = sbr.rel (0) target = $region53
    $region52: #{tpu_custom_call.1} parent=1 // pred_region
      %808 = dma.done [#allocation4], 128
    $region53: #{tpu_custom_call.1} parent=1 // pred_fallthru
      _
    %809 = vsyncpa [#allocation3], 1
    %810 = vsyncpa [#allocation6], 1
    %811 = vsyncpa [#allocation9], 1
    %812 = vsyncpa [#allocation4], 1

</llo_original>
